<compile_context>
chip_gen: v7x
topology: tpu7x:2x2x1
jax: 0.10.0
libtpu: 0.0.40
codegen_flags: <defaults>
</compile_context>

<pallas_src>
import functools
import numpy as np
import jax
import jax.numpy as jnp
from jax.experimental import pallas as pl

# small, deterministic problem sizes
N, F, H, C = 16, 32, 32, 8        # nodes, feature dim, hidden dim, classes
CP = 128                          # class dim padded to a full lane width
E = 24                            # raw edges (self-loops added -> E + N masked edges)
NUM_MASKS = 2                     # one explanation mask per class label 0..NUM_MASKS-1
NUM_CONFIGS = 1 + 2 * NUM_MASKS   # origin + (masked_i, maskout_i) per mask
B_PAD = 8                         # configs padded to a full sublane group


# ----------------------------- Pallas kernel -------------------------------
def gcn_node_softmax_kernel(a_flat_ref, g_ref, xw1_ref, w2_ref, p_ref):
    # layer 1 for ALL configs at once: (B*N, N) @ (N, H), then ReLU
    h = jnp.dot(a_flat_ref[...], xw1_ref[...], preferred_element_type=jnp.float32)
    h = jnp.maximum(h, 0.0)
    # layer 2, node_idx row only: block-diagonal gather matrix G folds the
    # per-config (1,N)@(N,H) reductions into one (B_pad, B*N)@(B*N, H) matmul
    z = jnp.dot(g_ref[...], h, preferred_element_type=jnp.float32)         # (B_pad, H)
    logits = jnp.dot(z, w2_ref[...], preferred_element_type=jnp.float32)   # (B_pad, CP)
    # per-config softmax over the real C classes only (padded lanes masked)
    lane = jax.lax.broadcasted_iota(jnp.int32, logits.shape, 1)
    logits = jnp.where(lane < C, logits, jnp.float32(-1e30))
    m = jnp.max(logits, axis=-1, keepdims=True)
    e = jnp.exp(logits - m)
    denom = jnp.sum(e, axis=-1, keepdims=True)
    # exact reciprocal (still EUP) for metric parity with the reference
    p_ref[...] = e * pl.reciprocal(denom, approx=False)


# -------------- fused adjacency build + precompute + kernel ----------------
@functools.partial(jax.jit, static_argnames=("node_idx",))
def eval_configs(edge_index_full, mask_stack, x, w1, w2p, *, node_idx):
    """One dispatch: build masked adjacencies, X@W1, gather matrix, run kernel.

    A[dst, src] += gate, with gate = 1 (origin, sigmoid(+inf)), sigmoid(m)
    (masked), 1 - sigmoid(m) (maskout, since sigmoid(-m) = 1 - sigmoid(m)).
    Returns (B_pad, CP) per-config softmax probabilities at `node_idx`.
    """
    num_nodes = x.shape[0]
    src, dst = edge_index_full[0], edge_index_full[1]
    num_masks = mask_stack.shape[0]
    b = 1 + 2 * num_masks
    b_pad = max(8, ((b + 7) // 8) * 8)

    ones = jnp.ones((edge_index_full.shape[1],), jnp.float32)
    a_ones = jnp.zeros((num_nodes, num_nodes), jnp.float32).at[dst, src].add(ones)
    gates = jax.nn.sigmoid(mask_stack.astype(jnp.float32))          # (num_masks, E+N)

    def scatter(g):
        return jnp.zeros((num_nodes, num_nodes), jnp.float32).at[dst, src].add(g)

    a_masked = jax.vmap(scatter)(gates)                             # (num_masks, N, N)
    a_maskout = a_ones[None, :, :] - a_masked                       # derived, no re-scatter
    pairs = jnp.stack([a_masked, a_maskout], axis=1).reshape(-1, num_nodes, num_nodes)
    a_batch = jnp.concatenate([a_ones[None], pairs], axis=0)        # (b, N, N)

    # fold configs into sublanes for the layer-1 matmul
    a_flat = a_batch.reshape(b * num_nodes, num_nodes)              # (b*N, N)

    # block-diagonal gather matrix for the node_idx row of layer 2:
    #   g[p, q*N + k] = (p == q) * A[q, node_idx, k]
    a_rows = a_batch[:, node_idx, :]                                # (b, N), static slice
    eye_pb = jnp.eye(b_pad, b, dtype=jnp.float32)                   # (b_pad, b)
    g = (eye_pb[:, :, None] * a_rows[None, :, :]).reshape(b_pad, b * num_nodes)

    xw1 = jnp.dot(x, w1)                                            # mask-independent

    flops = (2 * (b * num_nodes) * num_nodes * xw1.shape[1]         # layer 1
             + 2 * b_pad * (b * num_nodes) * xw1.shape[1]           # node-row aggregation
             + 2 * b_pad * xw1.shape[1] * CP)                       # output projection
    transcendentals = b_pad * CP + b_pad
    bytes_accessed = 4 * (a_flat.size + g.size + xw1.size + w2p.size + b_pad * CP)

    return pl.pallas_call(
        gcn_node_softmax_kernel,
        out_shape=jax.ShapeDtypeStruct((b_pad, CP), jnp.float32),
        grid=(1,),                                                  # single step, no per-config overhead
        in_specs=[
            pl.BlockSpec((b * num_nodes, num_nodes), lambda i: (0, 0)),   # stacked adjacencies
            pl.BlockSpec((b_pad, b * num_nodes), lambda i: (0, 0)),       # node-row gather matrix
            pl.BlockSpec((num_nodes, xw1.shape[1]), lambda i: (0, 0)),    # shared X @ W1
            pl.BlockSpec((w2p.shape[0], CP), lambda i: (0, 0)),           # shared padded W2
        ],
        out_specs=pl.BlockSpec((b_pad, CP), lambda i: (0, 0)),
        cost_estimate=pl.CostEstimate(
            flops=flops,
            transcendentals=transcendentals,
            bytes_accessed=bytes_accessed,
        ),
    )(a_flat, g, xw1, w2p)


# ------------------------------ glue / metrics ------------------------------
class XCollector:
    """Host-side mirror of the PyTorch XCollector (Fidelity+/Fidelity-)."""

    def __init__(self, sparsity=None):
        self._related_preds = {'zero': [], 'masked': [], 'maskout': [],
                               'origin': [], 'sparsity': []}
        self._targets = []
        self.masks = []
        self._sparsity = sparsity

    def collect_data(self, masks, related_preds, label=0):
        for key, value in related_preds[label].items():
            self._related_preds[key].append(value)
        for key in self._related_preds:
            if key not in related_preds[0]:
                self._related_preds[key].append(None)
        self._targets.append(label)
        self.masks.append(masks)

    @property
    def fidelity(self):
        origin = np.asarray(self._related_preds['origin'], np.float32)
        maskout = np.asarray(self._related_preds['maskout'], np.float32)
        return float(np.mean(origin - maskout))

    @property
    def fidelity_inv(self):
        origin = np.asarray(self._related_preds['origin'], np.float32)
        masked = np.asarray(self._related_preds['masked'], np.float32)
        return float(np.mean(origin - masked))


class ExplanationProcessor:
    """JAX/Pallas equivalent of the PyTorch ExplanationProcessor forward."""

    def __init__(self, x, edge_index, w1, w2):
        self.x = x
        self.edge_index = edge_index          # (2, E): row0 = src, row1 = dst
        self.w1, self.w2 = w1, w2
        self.num_layers = 2                   # both layers share the same edge mask
        # zero-pad W2 output dim to CP lanes once (lane-dense kernel stores)
        self.w2p = jnp.zeros((w2.shape[0], CP), jnp.float32).at[:, :w2.shape[1]].set(w2)

    def eval_related_pred(self, masks, node_idx=0):
        num_nodes = self.x.shape[0]
        self_loops = jnp.stack([jnp.arange(num_nodes), jnp.arange(num_nodes)])
        ei_full = jnp.concatenate([self.edge_index, self_loops], axis=1)
        mask_stack = jnp.stack(masks)                              # (NUM_MASKS, E + N)

        probs = eval_configs(ei_full, mask_stack, self.x, self.w1, self.w2p,
                             node_idx=int(node_idx))               # one dispatch
        node_probs = np.asarray(jax.device_get(probs))             # ONE ~4 KB transfer

        related_preds = []
        for label in range(len(masks)):
            related_preds.append({
                # A = 0 => logits = 0 => uniform softmax; exact for this
                # bias-free model, so the -inf ("zero") forward is analytic.
                'zero': 1.0 / C,
                'masked': float(node_probs[1 + 2 * label, label]),
                'maskout': float(node_probs[2 + 2 * label, label]),
                'origin': float(node_probs[0, label]),
            })
        return related_preds

    def forward(self, y, masks, x_collector, node_idx=None):
        y_idx = 0 if node_idx is None else node_idx
        y_val = float(y[y_idx])                 # single scalar host read (matches .item())
        assert y_val == y_val                   # not NaN
        self.num_edges = self.edge_index.shape[1]
        self.num_nodes = self.x.shape[0]
        related_preds = self.eval_related_pred(masks, node_idx=y_idx)
        x_collector.collect_data(masks, related_preds, int(y_val))
        return related_preds


# --------------------------------- main ------------------------------------
if __name__ == "__main__":
    key = jax.random.PRNGKey(0)
    k1, k2, k3, k4, k5, k6, k7 = jax.random.split(key, 7)

    x = jax.random.normal(k1, (N, F), jnp.float32)
    w1 = 0.1 * jax.random.normal(k2, (F, H), jnp.float32)
    w2 = 0.1 * jax.random.normal(k3, (H, C), jnp.float32)
    src = jax.random.randint(k4, (E,), 0, N)
    dst = jax.random.randint(k5, (E,), 0, N)
    edge_index = jnp.stack([src, dst])
    masks = [jax.random.normal(jax.random.fold_in(k6, i), (E + N,), jnp.float32)
             for i in range(NUM_MASKS)]
    y = jax.random.randint(k7, (N,), 0, NUM_MASKS)

    processor = ExplanationProcessor(x, edge_index, w1, w2)

    # run the fused kernel once directly and block on it
    self_loops = jnp.stack([jnp.arange(N), jnp.arange(N)])
    ei_full = jnp.concatenate([edge_index, self_loops], axis=1)
    probs = eval_configs(ei_full, jnp.stack(masks), x, w1, processor.w2p, node_idx=0)
    jax.block_until_ready(probs)

    probs_np = np.asarray(probs)
    assert probs_np.shape == (B_PAD, CP)
    assert np.all(np.isfinite(probs_np))
    # exact reciprocal => per-row softmax sums to 1 over the real classes
    assert np.allclose(probs_np[:, :C].sum(axis=-1), 1.0, atol=1e-4)
    # padded lanes are exactly ~0
    assert np.all(np.abs(probs_np[:, C:]) < 1e-6)

    # full ExplanationProcessor forward + metric collection (one dispatch, one transfer)
    collector = XCollector()
    processor.forward(y, masks, collector, node_idx=0)

    fid = collector.fidelity
    fid_inv = collector.fidelity_inv
    assert fid == fid and fid_inv == fid_inv  # not NaN

    print("KERNEL_OK")
</pallas_src>

<mosaic_0001>
module attributes {stable_mosaic.version = 11 : i64} {
  func.func @gcn_node_softmax_kernel(%arg0: i32, %arg1: memref<80x16xf32, #tpu.memory_space<vmem>>, %arg2: memref<8x80xf32, #tpu.memory_space<vmem>>, %arg3: memref<16x32xf32, #tpu.memory_space<vmem>>, %arg4: memref<32x128xf32, #tpu.memory_space<vmem>>, %arg5: memref<8x128xf32, #tpu.memory_space<vmem>>) attributes {dimension_semantics = [#tpu.dimension_semantics<arbitrary>], iteration_bounds = array<i64: 1>, scalar_prefetch = 0 : i64, scratch_operands = 0 : i64, tpu.core_type = #tpu.core_type<tc>, window_params = [{pipeline_mode = #tpu.pipeline_mode<synchronous>, transform_indices = @transform_0, window_bounds = array<i64: 80, 16>}, {pipeline_mode = #tpu.pipeline_mode<synchronous>, transform_indices = @transform_1, window_bounds = array<i64: 8, 80>}, {pipeline_mode = #tpu.pipeline_mode<synchronous>, transform_indices = @transform_2, window_bounds = array<i64: 16, 32>}, {pipeline_mode = #tpu.pipeline_mode<synchronous>, transform_indices = @transform_3, window_bounds = array<i64: 32, 128>}, {pipeline_mode = #tpu.pipeline_mode<synchronous>, transform_indices = @transform_4, window_bounds = array<i64: 8, 128>}]} {
    %c0 = arith.constant 0 : index
    %c0_0 = arith.constant 0 : index
    %0 = vector.load %arg1[%c0, %c0_0] : memref<80x16xf32, #tpu.memory_space<vmem>>, vector<80x16xf32>
    %c0_1 = arith.constant 0 : index
    %c0_2 = arith.constant 0 : index
    %1 = vector.load %arg3[%c0_1, %c0_2] : memref<16x32xf32, #tpu.memory_space<vmem>>, vector<16x32xf32>
    %cst = arith.constant dense<0.000000e+00> : vector<80x32xf32>
    %2 = tpu.matmul %0, %1, %cst {dimension_numbers = #tpu.dot_dimension_numbers<[1], [0], [0], [1], [0, 0, 1, 1], [], []>} : vector<80x16xf32>, vector<16x32xf32>, vector<80x32xf32> -> vector<80x32xf32>
    %cst_3 = arith.constant 0.000000e+00 : f32
    %3 = vector.broadcast %cst_3 : f32 to vector<80x32xf32>
    %4 = arith.maximumf %2, %3 : vector<80x32xf32>
    %c0_4 = arith.constant 0 : index
    %c0_5 = arith.constant 0 : index
    %5 = vector.load %arg2[%c0_4, %c0_5] : memref<8x80xf32, #tpu.memory_space<vmem>>, vector<8x80xf32>
    %cst_6 = arith.constant dense<0.000000e+00> : vector<8x32xf32>
    %6 = tpu.matmul %5, %4, %cst_6 {dimension_numbers = #tpu.dot_dimension_numbers<[1], [0], [0], [1], [0, 0, 1, 1], [], []>} : vector<8x80xf32>, vector<80x32xf32>, vector<8x32xf32> -> vector<8x32xf32>
    %c0_7 = arith.constant 0 : index
    %c0_8 = arith.constant 0 : index
    %7 = vector.load %arg4[%c0_7, %c0_8] : memref<32x128xf32, #tpu.memory_space<vmem>>, vector<32x128xf32>
    %cst_9 = arith.constant dense<0.000000e+00> : vector<8x128xf32>
    %8 = tpu.matmul %6, %7, %cst_9 {dimension_numbers = #tpu.dot_dimension_numbers<[1], [0], [0], [1], [0, 0, 1, 1], [], []>} : vector<8x32xf32>, vector<32x128xf32>, vector<8x128xf32> -> vector<8x128xf32>
    %9 = tpu.iota {dimensions = array<i32: 1>} : vector<8x128xi32>
    %c8_i32 = arith.constant 8 : i32
    %10 = vector.broadcast %c8_i32 : i32 to vector<8x128xi32>
    %11 = arith.cmpi slt, %9, %10 : vector<8x128xi32>
    %cst_10 = arith.constant -1.000000e+30 : f32
    %12 = vector.broadcast %cst_10 : f32 to vector<8x128xf32>
    %13 = arith.select %11, %8, %12 : vector<8x128xi1>, vector<8x128xf32>
    %cst_11 = arith.constant dense<0xFF800000> : vector<8xf32>
    %14 = vector.multi_reduction <maximumf>, %13, %cst_11 [1] : vector<8x128xf32> to vector<8xf32>
    %15 = vector.shape_cast %14 : vector<8xf32> to vector<8x1xf32>
    %16 = vector.broadcast %15 : vector<8x1xf32> to vector<8x128xf32>
    %17 = arith.subf %13, %16 : vector<8x128xf32>
    %18 = math.exp %17 : vector<8x128xf32>
    %cst_12 = arith.constant dense<0.000000e+00> : vector<8xf32>
    %19 = vector.multi_reduction <add>, %18, %cst_12 [1] : vector<8x128xf32> to vector<8xf32>
    %20 = vector.shape_cast %19 : vector<8xf32> to vector<8x1xf32>
    %21 = tpu.reciprocal %20 : vector<8x1xf32> -> vector<8x1xf32>
    %22 = vector.broadcast %21 : vector<8x1xf32> to vector<8x128xf32>
    %23 = arith.mulf %18, %22 : vector<8x128xf32>
    %c0_13 = arith.constant 0 : index
    %c0_14 = arith.constant 0 : index
    %24 = vector.load %arg5[%c0_13, %c0_14] : memref<8x128xf32, #tpu.memory_space<vmem>>, vector<8x128xf32>
    tpu.vector_store %arg5[%c0_13, %c0_14], %23 {strides = array<i32>} : memref<8x128xf32, #tpu.memory_space<vmem>>, vector<8x128xf32>,
    return
  }
  func.func @transform_0(%arg0: i32) -> (i32, i32) {
    %c0_i32 = arith.constant 0 : i32
    %c0_i32_0 = arith.constant 0 : i32
    %c0_i32_1 = arith.constant 0 : i32
    return %c0_i32, %c0_i32_0 : i32, i32
  }
  func.func @transform_1(%arg0: i32) -> (i32, i32) {
    %c0_i32 = arith.constant 0 : i32
    %c0_i32_0 = arith.constant 0 : i32
    %c0_i32_1 = arith.constant 0 : i32
    return %c0_i32, %c0_i32_0 : i32, i32
  }
  func.func @transform_2(%arg0: i32) -> (i32, i32) {
    %c0_i32 = arith.constant 0 : i32
    %c0_i32_0 = arith.constant 0 : i32
    %c0_i32_1 = arith.constant 0 : i32
    return %c0_i32, %c0_i32_0 : i32, i32
  }
  func.func @transform_3(%arg0: i32) -> (i32, i32) {
    %c0_i32 = arith.constant 0 : i32
    %c0_i32_0 = arith.constant 0 : i32
    %c0_i32_1 = arith.constant 0 : i32
    return %c0_i32, %c0_i32_0 : i32, i32
  }
  func.func @transform_4(%arg0: i32) -> (i32, i32) {
    %c0_i32 = arith.constant 0 : i32
    %c0_i32_0 = arith.constant 0 : i32
    %c0_i32_1 = arith.constant 0 : i32
    return %c0_i32, %c0_i32_0 : i32, i32
  }
}

</mosaic_0001>

<llo_original>
// kernel: eval_configs.1
$region0: #{eval_configs.1}
  #allocation0 [shape = 'u32[]', space=smem, size = 0x4, offset = 0x4, fixed_abs, tag = 'smem constant byte address 0x4 - core index']
  #allocation1 [shape = 'u32[144,128]{1,0:T(1,128)}', space=vmem, size = 0x12000, scoped, tag = 'internal scratch']
  %s0 = inlined_call_operand.vmem [shape: f32[80,16], index: 0, kind: input, shape index: {}]
  %s1 = inlined_call_operand.vmem [shape: f32[8,80], index: 1, kind: input, shape index: {}]
  %s2 = inlined_call_operand.vmem [shape: f32[16,32], index: 2, kind: input, shape index: {}]
  %s3 = inlined_call_operand.vmem [shape: f32[32,128], index: 3, kind: input, shape index: {}]
  %s4 = inlined_call_operand.hbm [shape: f32[8,128], index: 4, kind: output, shape index: {}]
  %s5 = sld [smem:[#allocation0]]
  $region26: #{eval_configs.1} parent=0
    _
  %s7 = ssub.s32 1, %s5
  %s8 = scalar_select 0, %s7, %s5
  $region1: #{eval_configs.1} parent=0
    #allocation2 [shape = 'u8[4096]{0}', space=vmem, size = 0x1000, scoped, tag = 'output window, operand 0, single buffered']
    #allocation3 [shape = 's32[1]{0}', space=sflag, size = 0x4, scoped, tag = 'scoped memory for eval_configs.1']
    %9 = vsyncpa [#allocation3], 0
    // Predicated region
    $region2: #{eval_configs.1} parent=1 // pred_check
      _
    $region3: #{eval_configs.1} parent=1 // pred_check_branch
      %11 = sbr.rel (0) target = $region5
    $region4: #{eval_configs.1} parent=1 // pred_region
      _
    $region5: #{eval_configs.1} parent=1 // pred_fallthru
      _
    // Predicated region
    $region6: #{eval_configs.1} parent=1 // pred_check
      _
    $region7: #{eval_configs.1} parent=1 // pred_check_branch
      %13 = sbr.rel (0) target = $region9
    $region8: #{eval_configs.1} parent=1 // pred_region
      _
    $region9: #{eval_configs.1} parent=1 // pred_fallthru
      _
    // Predicated region
    $region10: #{eval_configs.1} parent=1 // pred_check
      _
    $region11: #{eval_configs.1} parent=1 // pred_check_branch
      %15 = sbr.rel (0) target = $region13
    $region12: #{eval_configs.1} parent=1 // pred_region
      _
    $region13: #{eval_configs.1} parent=1 // pred_fallthru
      _
    // Predicated region
    $region14: #{eval_configs.1} parent=1 // pred_check
      _
    $region15: #{eval_configs.1} parent=1 // pred_check_branch
      %17 = sbr.rel (0) target = $region17
    $region16: #{eval_configs.1} parent=1 // pred_region
      _
    $region17: #{eval_configs.1} parent=1 // pred_fallthru
      _
    %v18 = vld [vmem:[%s0] sm:$0xff]
    %v19 = vld [vmem:[%s0 + $0x8] sm:$0xff]
    %v20 = vld [vmem:[%s0 + $0x10] sm:$0xff]
    %v21 = vld [vmem:[%s0 + $0x18] sm:$0xff]
    %v22 = vld [vmem:[%s0 + $0x20] sm:$0xff]
    %v23 = vld [vmem:[%s0 + $0x28] sm:$0xff]
    %v24 = vld [vmem:[%s0 + $0x30] sm:$0xff]
    %v25 = vld [vmem:[%s0 + $0x38] sm:$0xff]
    %v26 = vld [vmem:[%s0 + $0x40] sm:$0xff]
    %v27 = vld [vmem:[%s0 + $0x48] sm:$0xff]
    %v28 = vld [vmem:[%s2] sm:$0xff]
    %v29 = vld [vmem:[%s2 + $0x8] sm:$0xff]
    %vm30 = vcmask 130048
    %v32 = vsel %vm30, %v18, 0
    %v35 = vsel %vm30, %v19, 0
    %v38 = vsel %vm30, %v20, 0
    %v41 = vsel %vm30, %v21, 0
    %v44 = vsel %vm30, %v22, 0
    %v47 = vsel %vm30, %v23, 0
    %v50 = vsel %vm30, %v24, 0
    %v53 = vsel %vm30, %v25, 0
    %v56 = vsel %vm30, %v26, 0
    %v59 = vsel %vm30, %v27, 0
    %61 = vmatprep.subr.mxu0 0.0
    %62 = vmatpush1.msra.mxu0 %v28
    %63 = vmatprep.subr.mxu0 0.0
    %64 = vmatpush1.msra.mxu0 %v29
    %65 = vmatprep.subr.mxu0 0.0
    %66 = vmatpush1.msra.mxu0 0.0
    %67 = vmatprep.subr.mxu0 0.0
    %68 = vmatpush1.msra.mxu0 0.0
    %69 = vmatprep.subr.mxu0 0.0
    %70 = vmatpush1.msra.mxu0 0.0
    %71 = vmatprep.subr.mxu0 0.0
    %72 = vmatpush1.msra.mxu0 0.0
    %73 = vmatprep.subr.mxu0 0.0
    %74 = vmatpush1.msra.mxu0 0.0
    %75 = vmatprep.subr.mxu0 0.0
    %76 = vmatpush1.msra.mxu0 0.0
    %77 = vmatprep.subr.mxu0 0.0
    %78 = vmatpush1.msra.mxu0 0.0
    %79 = vmatprep.subr.mxu0 0.0
    %80 = vmatpush1.msra.mxu0 0.0
    %81 = vmatprep.subr.mxu0 0.0
    %82 = vmatpush1.msra.mxu0 0.0
    %83 = vmatprep.subr.mxu0 0.0
    %84 = vmatpush1.msra.mxu0 0.0
    %85 = vmatprep.subr.mxu0 0.0
    %86 = vmatpush1.msra.mxu0 0.0
    %87 = vmatprep.subr.mxu0 0.0
    %88 = vmatpush1.msra.mxu0 0.0
    %89 = vmatprep.subr.mxu0 0.0
    %90 = vmatpush1.msra.mxu0 0.0
    %91 = vmatprep.subr.mxu0 0.0
    %92 = vmatpush1.msra.mxu0 0.0
    %93 = vmatprep.subr.mxu0 0.0
    %94 = vmatpush1.msra.mxu0 0.0
    %95 = vmatprep.subr.mxu0 0.0
    %96 = vmatpush1.msra.mxu0 0.0
    %97 = vmatprep.subr.mxu0 0.0
    %98 = vmatpush1.msra.mxu0 0.0
    %99 = vmatprep.subr.mxu0 0.0
    %100 = vmatpush1.msra.mxu0 0.0
    %101 = vmatprep.subr.mxu0 0.0
    %102 = vmatpush1.msra.mxu0 0.0
    %103 = vmatprep.subr.mxu0 0.0
    %104 = vmatpush1.msra.mxu0 0.0
    %105 = vmatprep.subr.mxu0 0.0
    %106 = vmatpush1.msra.mxu0 0.0
    %107 = vmatprep.subr.mxu0 0.0
    %108 = vmatpush1.msra.mxu0 0.0
    %109 = vmatprep.subr.mxu0 0.0
    %110 = vmatpush1.msra.mxu0 0.0
    %111 = vmatprep.subr.mxu0 0.0
    %112 = vmatpush1.msra.mxu0 0.0
    %113 = vmatprep.subr.mxu0 0.0
    %114 = vmatpush1.msra.mxu0 0.0
    %115 = vmatprep.subr.mxu0 0.0
    %116 = vmatpush1.msra.mxu0 0.0
    %117 = vmatprep.subr.mxu0 0.0
    %118 = vmatpush1.msra.mxu0 0.0
    %119 = vmatprep.subr.mxu0 0.0
    %120 = vmatpush1.msra.mxu0 0.0
    %121 = vmatprep.subr.mxu0 0.0
    %122 = vmatpush1.msra.mxu0 0.0
    %123 = vmatprep.subr.mxu0 0.0
    %124 = vmatpush1.msra.mxu0 0.0
    %125 = vmatprep.mubr.f32.mxu0 0.0
    %126 = vmatmul.mubr.f32.gmra.mrb[0].mxu0 %v32
    %v127 = vpop.f32.mrb[0].mxu0
    %v128 = vadd.f32 0.0, %v127
    %v129 = vpop.f32.mrb[0].mxu0
    %130 = vmatprep.mubr.f32.mxu0 0.0
    %131 = vmatmul.mubr.f32.gmra.mrb[0].mxu0 %v35
    %v132 = vpop.f32.mrb[0].mxu0
    %v133 = vadd.f32 0.0, %v132
    %v134 = vpop.f32.mrb[0].mxu0
    %135 = vmatprep.mubr.f32.mxu0 0.0
    %136 = vmatmul.mubr.f32.gmra.mrb[0].mxu0 %v38
    %v137 = vpop.f32.mrb[0].mxu0
    %v138 = vadd.f32 0.0, %v137
    %v139 = vpop.f32.mrb[0].mxu0
    %140 = vmatprep.mubr.f32.mxu0 0.0
    %141 = vmatmul.mubr.f32.gmra.mrb[0].mxu0 %v41
    %v142 = vpop.f32.mrb[0].mxu0
    %v143 = vadd.f32 0.0, %v142
    %v144 = vpop.f32.mrb[0].mxu0
    %145 = vmatprep.mubr.f32.mxu0 0.0
    %146 = vmatmul.mubr.f32.gmra.mrb[0].mxu0 %v44
    %v147 = vpop.f32.mrb[0].mxu0
    %v148 = vadd.f32 0.0, %v147
    %v149 = vpop.f32.mrb[0].mxu0
    %150 = vmatprep.mubr.f32.mxu0 0.0
    %151 = vmatmul.mubr.f32.gmra.mrb[0].mxu0 %v47
    %v152 = vpop.f32.mrb[0].mxu0
    %v153 = vadd.f32 0.0, %v152
    %v154 = vpop.f32.mrb[0].mxu0
    %155 = vmatprep.mubr.f32.mxu0 0.0
    %156 = vmatmul.mubr.f32.gmra.mrb[0].mxu0 %v50
    %v157 = vpop.f32.mrb[0].mxu0
    %v158 = vadd.f32 0.0, %v157
    %v159 = vpop.f32.mrb[0].mxu0
    %160 = vmatprep.mubr.f32.mxu0 0.0
    %161 = vmatmul.mubr.f32.gmra.mrb[0].mxu0 %v53
    %v162 = vpop.f32.mrb[0].mxu0
    %v163 = vadd.f32 0.0, %v162
    %v164 = vpop.f32.mrb[0].mxu0
    %165 = vmatprep.mubr.f32.mxu0 0.0
    %166 = vmatmul.mubr.f32.gmra.mrb[0].mxu0 %v56
    %v167 = vpop.f32.mrb[0].mxu0
    %v168 = vadd.f32 0.0, %v167
    %v169 = vpop.f32.mrb[0].mxu0
    %170 = vmatprep.mubr.f32.mxu0 0.0
    %171 = vmatmul.mubr.f32.gmra.mrb[0].mxu0 %v59
    %v172 = vpop.f32.mrb[0].mxu0
    %v173 = vadd.f32 0.0, %v172
    %v174 = vpop.f32.mrb[0].mxu0
    %175 = vdwg.mxu0
    %v176 = vmax.f32 %v128, 0.0
    %v177 = vmax.f32 %v133, 0.0
    %v178 = vmax.f32 %v138, 0.0
    %v179 = vmax.f32 %v143, 0.0
    %v180 = vmax.f32 %v148, 0.0
    %v181 = vmax.f32 %v153, 0.0
    %v182 = vmax.f32 %v158, 0.0
    %v183 = vmax.f32 %v163, 0.0
    %v184 = vmax.f32 %v168, 0.0
    %v185 = vmax.f32 %v173, 0.0
    %v186 = vld [vmem:[%s1] sm:$0xff]
    %vm187 = vcmask 654336
    %v189 = vsel %vm187, %v186, 0
    %191 = vmatprep.subr.mxu0 0.0
    %192 = vmatpush1.msra.mxu0 %v176
    %193 = vmatprep.subr.mxu0 0.0
    %194 = vmatpush1.msra.mxu0 %v177
    %195 = vmatprep.subr.mxu0 0.0
    %196 = vmatpush1.msra.mxu0 %v178
    %197 = vmatprep.subr.mxu0 0.0
    %198 = vmatpush1.msra.mxu0 %v179
    %199 = vmatprep.subr.mxu0 0.0
    %200 = vmatpush1.msra.mxu0 %v180
    %201 = vmatprep.subr.mxu0 0.0
    %202 = vmatpush1.msra.mxu0 %v181
    %203 = vmatprep.subr.mxu0 0.0
    %204 = vmatpush1.msra.mxu0 %v182
    %205 = vmatprep.subr.mxu0 0.0
    %206 = vmatpush1.msra.mxu0 %v183
    %207 = vmatprep.subr.mxu0 0.0
    %208 = vmatpush1.msra.mxu0 %v184
    %209 = vmatprep.subr.mxu0 0.0
    %210 = vmatpush1.msra.mxu0 %v185
    %211 = vmatprep.subr.mxu0 0.0
    %212 = vmatpush1.msra.mxu0 0.0
    %213 = vmatprep.subr.mxu0 0.0
    %214 = vmatpush1.msra.mxu0 0.0
    %215 = vmatprep.subr.mxu0 0.0
    %216 = vmatpush1.msra.mxu0 0.0
    %217 = vmatprep.subr.mxu0 0.0
    %218 = vmatpush1.msra.mxu0 0.0
    %219 = vmatprep.subr.mxu0 0.0
    %220 = vmatpush1.msra.mxu0 0.0
    %221 = vmatprep.subr.mxu0 0.0
    %222 = vmatpush1.msra.mxu0 0.0
    %223 = vmatprep.subr.mxu0 0.0
    %224 = vmatpush1.msra.mxu0 0.0
    %225 = vmatprep.subr.mxu0 0.0
    %226 = vmatpush1.msra.mxu0 0.0
    %227 = vmatprep.subr.mxu0 0.0
    %228 = vmatpush1.msra.mxu0 0.0
    %229 = vmatprep.subr.mxu0 0.0
    %230 = vmatpush1.msra.mxu0 0.0
    %231 = vmatprep.subr.mxu0 0.0
    %232 = vmatpush1.msra.mxu0 0.0
    %233 = vmatprep.subr.mxu0 0.0
    %234 = vmatpush1.msra.mxu0 0.0
    %235 = vmatprep.subr.mxu0 0.0
    %236 = vmatpush1.msra.mxu0 0.0
    %237 = vmatprep.subr.mxu0 0.0
    %238 = vmatpush1.msra.mxu0 0.0
    %239 = vmatprep.subr.mxu0 0.0
    %240 = vmatpush1.msra.mxu0 0.0
    %241 = vmatprep.subr.mxu0 0.0
    %242 = vmatpush1.msra.mxu0 0.0
    %243 = vmatprep.subr.mxu0 0.0
    %244 = vmatpush1.msra.mxu0 0.0
    %245 = vmatprep.subr.mxu0 0.0
    %246 = vmatpush1.msra.mxu0 0.0
    %247 = vmatprep.subr.mxu0 0.0
    %248 = vmatpush1.msra.mxu0 0.0
    %249 = vmatprep.subr.mxu0 0.0
    %250 = vmatpush1.msra.mxu0 0.0
    %251 = vmatprep.subr.mxu0 0.0
    %252 = vmatpush1.msra.mxu0 0.0
    %253 = vmatprep.subr.mxu0 0.0
    %254 = vmatpush1.msra.mxu0 0.0
    %255 = vmatprep.mubr.f32.mxu0 0.0
    %256 = vmatmul.mubr.f32.gmra.mrb[0].mxu0 %v189
    %v257 = vpop.f32.mrb[0].mxu0
    %v258 = vadd.f32 0.0, %v257
    %v259 = vpop.f32.mrb[0].mxu0
    %260 = vdwg.mxu0
    %v261 = vld [vmem:[%s3] sm:$0xff]
    %v262 = vld [vmem:[%s3 + $0x8] sm:$0xff]
    %v263 = vld [vmem:[%s3 + $0x10] sm:$0xff]
    %v264 = vld [vmem:[%s3 + $0x18] sm:$0xff]
    %vm265 = vcmask 261120
    %v267 = vsel %vm265, %v258, 0
    %269 = vmatprep.subr.mxu0 0.0
    %270 = vmatpush1.msra.mxu0 %v261
    %271 = vmatprep.subr.mxu0 0.0
    %272 = vmatpush1.msra.mxu0 %v262
    %273 = vmatprep.subr.mxu0 0.0
    %274 = vmatpush1.msra.mxu0 %v263
    %275 = vmatprep.subr.mxu0 0.0
    %276 = vmatpush1.msra.mxu0 %v264
    %277 = vmatprep.subr.mxu0 0.0
    %278 = vmatpush1.msra.mxu0 0.0
    %279 = vmatprep.subr.mxu0 0.0
    %280 = vmatpush1.msra.mxu0 0.0
    %281 = vmatprep.subr.mxu0 0.0
    %282 = vmatpush1.msra.mxu0 0.0
    %283 = vmatprep.subr.mxu0 0.0
    %284 = vmatpush1.msra.mxu0 0.0
    %285 = vmatprep.subr.mxu0 0.0
    %286 = vmatpush1.msra.mxu0 0.0
    %287 = vmatprep.subr.mxu0 0.0
    %288 = vmatpush1.msra.mxu0 0.0
    %289 = vmatprep.subr.mxu0 0.0
    %290 = vmatpush1.msra.mxu0 0.0
    %291 = vmatprep.subr.mxu0 0.0
    %292 = vmatpush1.msra.mxu0 0.0
    %293 = vmatprep.subr.mxu0 0.0
    %294 = vmatpush1.msra.mxu0 0.0
    %295 = vmatprep.subr.mxu0 0.0
    %296 = vmatpush1.msra.mxu0 0.0
    %297 = vmatprep.subr.mxu0 0.0
    %298 = vmatpush1.msra.mxu0 0.0
    %299 = vmatprep.subr.mxu0 0.0
    %300 = vmatpush1.msra.mxu0 0.0
    %301 = vmatprep.subr.mxu0 0.0
    %302 = vmatpush1.msra.mxu0 0.0
    %303 = vmatprep.subr.mxu0 0.0
    %304 = vmatpush1.msra.mxu0 0.0
    %305 = vmatprep.subr.mxu0 0.0
    %306 = vmatpush1.msra.mxu0 0.0
    %307 = vmatprep.subr.mxu0 0.0
    %308 = vmatpush1.msra.mxu0 0.0
    %309 = vmatprep.subr.mxu0 0.0
    %310 = vmatpush1.msra.mxu0 0.0
    %311 = vmatprep.subr.mxu0 0.0
    %312 = vmatpush1.msra.mxu0 0.0
    %313 = vmatprep.subr.mxu0 0.0
    %314 = vmatpush1.msra.mxu0 0.0
    %315 = vmatprep.subr.mxu0 0.0
    %316 = vmatpush1.msra.mxu0 0.0
    %317 = vmatprep.subr.mxu0 0.0
    %318 = vmatpush1.msra.mxu0 0.0
    %319 = vmatprep.subr.mxu0 0.0
    %320 = vmatpush1.msra.mxu0 0.0
    %321 = vmatprep.subr.mxu0 0.0
    %322 = vmatpush1.msra.mxu0 0.0
    %323 = vmatprep.subr.mxu0 0.0
    %324 = vmatpush1.msra.mxu0 0.0
    %325 = vmatprep.subr.mxu0 0.0
    %326 = vmatpush1.msra.mxu0 0.0
    %327 = vmatprep.subr.mxu0 0.0
    %328 = vmatpush1.msra.mxu0 0.0
    %329 = vmatprep.subr.mxu0 0.0
    %330 = vmatpush1.msra.mxu0 0.0
    %331 = vmatprep.subr.mxu0 0.0
    %332 = vmatpush1.msra.mxu0 0.0
    %333 = vmatprep.mubr.f32.mxu0 0.0
    %334 = vmatmul.mubr.f32.gmra.mrb[0].mxu0 %v267
    %v335 = vpop.f32.mrb[0].mxu0
    %v336 = vadd.f32 0.0, %v335
    %v337 = vpop.f32.mrb[0].mxu0
    %338 = vdwg.mxu0
    %v339 = vlaneseq
    %v340 = vand.u32 %v339, 127
    %vm341 = vcmp.lt.s32.totalorder %v340, 8
    %v342 = vsel %vm341, %v336, -1e+30
    %343 = vmax.xlane.f32.xlu0 %v342
    %v344 = vpop.xlane.xlu0 %343
    %v345 = vsub.f32 %v342, %v344
    %v346 = vmul.f32 %v345, 1.442695
    %v347 = vpow.pop %v346
    %348 = vadd.xlane.f32.xlu0 %v347
    %v349 = vpop.xlane.xlu0 %348
    %v350 = vrcp.pop %v349
    %v351 = vmul.f32 %v347, %v350
    %352 = vst [vmem:[#allocation2] sm:$0xff] %v351
    // Predicated region
    $region18: #{eval_configs.1} parent=1 // pred_check
      _
    $region19: #{eval_configs.1} parent=1 // pred_check_branch
      %354 = sbr.rel (0) target = $region21
    $region20: #{eval_configs.1} parent=1 // pred_region
      %s356 = ssub.s32 128, 128
      %357 = vsyncadd [#allocation3], %s356
      %s359 = sshll.u32 [#allocation2], 4
      %s360 = int_to_ptr.vmem [resolvable:$true] %s359
      %362 = dma.vmem_to_hbm [thread:$0]  %s360, 128, %s4, [#allocation3]
    $region21: #{eval_configs.1} parent=1 // pred_fallthru
      _
    // Predicated region
    $region22: #{eval_configs.1} parent=1 // pred_check
      _
    $region23: #{eval_configs.1} parent=1 // pred_check_branch
      %364 = sbr.rel (0) target = $region25
    $region24: #{eval_configs.1} parent=1 // pred_region
      %365 = dma.done [#allocation3], 128
    $region25: #{eval_configs.1} parent=1 // pred_fallthru
      _
    %366 = vsyncpa [#allocation3], 1

</llo_original>
